<compile_context>
chip_gen: v6e
topology: v6e:2x2x1
jax: 0.10.0
libtpu: 0.0.40
codegen_flags: <defaults>
</compile_context>

<pallas_src>
import jax
import jax.numpy as jnp
from jax.experimental import pallas as pl
from jax.experimental.pallas import tpu as pltpu

LN_EPS = 1e-12


def _round_up(x, m):
    return (x + m - 1) // m * m


def _ceil_div(a, b):
    return -(-a // b)


def nap_kernel(x_ref, w1_ref, consts_ref, b2_ref, o_ref):
    # NOTE: the last grid tile's x block extends past row N; those padded rows
    # run ReLU/LayerNorm/rsqrt on undefined data. This is safe ONLY because
    # there is no cross-row reduction and the wrapper slices the padded output
    # lanes off. Do not add any batch-dim reduction here without masking.

    # ---- Linear(hidden, hidden) on the MXU: bf16 operands, f32 accumulation ----
    # astype is a no-op if the caller already streams x in bf16 (preferred).
    x_bf = x_ref[...].astype(jnp.bfloat16)
    h = jnp.dot(x_bf, w1_ref[...], preferred_element_type=jnp.float32)

    b1 = consts_ref[0:1, :]
    gamma = consts_ref[1:2, :]
    beta = consts_ref[2:3, :]
    w2 = consts_ref[3:4, :]

    # ---- ReLU ----
    h = jnp.maximum(h + b1, 0.0)

    # ---- BertLayerNorm over the hidden axis (f32), fused single-pass stats ----
    inv_h = 1.0 / h.shape[-1]
    s1 = jnp.sum(h, axis=-1, keepdims=True)
    s2 = jnp.sum(h * h, axis=-1, keepdims=True)
    u = s1 * inv_h
    var = jnp.maximum(s2 * inv_h - u * u, 0.0)   # clamp tiny negative cancellation
    hn = (h - u) * jax.lax.rsqrt(var + LN_EPS)
    hn = hn * gamma + beta

    # Dropout: identity in eval/inference mode.

    # ---- Linear(hidden, 1), bf16, written lane-dense ----
    # Contract the w2 row (1, H) against hn (tm, H) along H (transposed-RHS
    # dot_general) so the result is a (1, tm) row: full-lane stores instead of
    # masked (tm, 1) column stores.
    out = jax.lax.dot_general(
        w2.astype(jnp.bfloat16), hn.astype(jnp.bfloat16),
        dimension_numbers=(((1,), (1,)), ((), ())),
        preferred_element_type=jnp.float32)
    o_ref[...] = (out + b2_ref[0, 0]).astype(o_ref.dtype)


def _choose_tile(N, tm):
    """Row tile: 8-aligned single tile for tiny N; otherwise 128-aligned and
    capped at round_up(ceil(N/2), 128) so v7x's two TensorCores both get work."""
    if N < 256:
        return _round_up(max(N, 1), 8)
    tm_eff = _round_up(min(tm, N), 128)
    two_core_cap = _round_up(_ceil_div(N, 2), 128)   # guarantee >= 2 tiles
    return max(128, min(tm_eff, two_core_cap))


def _vmem_limit(tm, H, x_bytes_per_elem, x_buffers):
    """Footprint-derived VMEM budget, clipped to 48 MiB (headroom on v7x's 64 MiB)."""
    w1 = 2 * H * H                                       # resident bf16 W1
    x_bufs = x_buffers * tm * H * x_bytes_per_elem       # pipelined x tiles
    interm = 4 * tm * H * 4                              # f32/bf16 intermediates
    consts = 8 * max(H, 128) * 4                         # padded (4,H) consts
    outb = 2 * 8 * max(tm, 128) * 4                      # (1, tm) output buffers
    need = w1 + x_bufs + interm + consts + outb
    limit = 2 * need + (8 << 20)                         # compiler-scratch headroom
    return int(max(32 << 20, min(limit, 48 << 20)))


def next_action_prediction(x, params, *, tm=512, x_buffers=2):
    """x: (N, H), f32 or (preferably) bf16. params: (w1 (H,H) stored as (in,out),
    b1 (1,H), gamma (1,H), beta (1,H), w2 (1,H) [PyTorch Linear(H,1).weight layout],
    b2 (1,1)), all f32. Returns (N, 1) in x.dtype.

    Tuning: sweep tm in {512, 1024} on v6e/v7x; 256-512 suffices on v5e
    (MXU-bound above H~500). Set x_buffers=3 on v6e if the x DMA is exposed."""
    N, H = x.shape
    w1, b1, gamma, beta, w2, b2 = params

    tm_eff = _choose_tile(N, tm)
    n_tiles = _ceil_div(N, tm_eff)

    # Resident W1 in bf16: halves its DMA + VMEM footprint, MXU-native.
    w1_bf = w1.astype(jnp.bfloat16)
    # Pack the four (1, H) vectors into one single-buffered (4, H) constant.
    consts = jnp.concatenate(
        [b1.astype(jnp.float32), gamma.astype(jnp.float32),
         beta.astype(jnp.float32), w2.astype(jnp.float32)], axis=0)

    const1 = pl.Buffered(1)          # constants never refetch -> single buffer
    xbuf = pl.Buffered(x_buffers)    # x row tiles: 2 (default) or 3 (v6e deep pipe)

    vmem_limit = _vmem_limit(tm_eff, H, x.dtype.itemsize, x_buffers)

    out_row = pl.pallas_call(
        nap_kernel,
        out_shape=jax.ShapeDtypeStruct((1, n_tiles * tm_eff), jnp.float32),
        grid_spec=pltpu.PrefetchScalarGridSpec(
            num_scalar_prefetch=0,
            grid=(n_tiles,),
            in_specs=[
                pl.BlockSpec((tm_eff, H), lambda i: (i, 0), pipeline_mode=xbuf),   # x rows
                pl.BlockSpec((H, H), lambda i: (0, 0), pipeline_mode=const1),      # W1 bf16
                pl.BlockSpec((4, H), lambda i: (0, 0), pipeline_mode=const1),      # b1/gamma/beta/w2
                pl.BlockSpec(memory_space=pltpu.MemorySpace.SMEM),                 # b2 scalar
            ],
            out_specs=pl.BlockSpec((1, tm_eff), lambda i: (0, i)),
        ),
        compiler_params=pltpu.CompilerParams(
            dimension_semantics=("parallel",),
            vmem_limit_bytes=vmem_limit,
        ),
    )(x, w1_bf, consts, b2)

    # Lane-dense (1, n_tiles*tm) slab -> (N, 1); padded tail rows are discarded.
    return out_row.reshape(-1)[:N].reshape(N, 1).astype(x.dtype)


def _reference(x, params):
    w1, b1, gamma, beta, w2, b2 = params
    h = jnp.maximum(x @ w1 + b1, 0.0)
    u = jnp.mean(h, axis=-1, keepdims=True)
    s = jnp.mean((h - u) ** 2, axis=-1, keepdims=True)
    hn = (h - u) / jnp.sqrt(s + LN_EPS)
    hn = hn * gamma + beta
    return hn @ w2.T + b2


if __name__ == "__main__":
    batch, seq, hidden = 2, 8, 32
    key = jax.random.PRNGKey(0)
    kx, k1, k2, k3, k4 = jax.random.split(key, 5)

    # Input: (batch, seq, hidden) flattened to (N, hidden)
    x3 = jax.random.normal(kx, (batch, seq, hidden), dtype=jnp.float32)
    x = x3.reshape(batch * seq, hidden)

    # Deterministic synthetic parameters.
    w1 = jax.random.normal(k1, (hidden, hidden), dtype=jnp.float32) * 0.1   # (in, out)
    b1 = jax.random.normal(k2, (1, hidden), dtype=jnp.float32) * 0.1
    gamma = jnp.ones((1, hidden), dtype=jnp.float32)
    beta = jnp.zeros((1, hidden), dtype=jnp.float32)
    w2 = jax.random.normal(k3, (1, hidden), dtype=jnp.float32) * 0.1        # PyTorch (1, H)
    b2 = jax.random.normal(k4, (1, 1), dtype=jnp.float32) * 0.1
    params = (w1, b1, gamma, beta, w2, b2)

    out = next_action_prediction(x, params)
    out = jax.block_until_ready(out)

    ref = _reference(x, params)
    assert out.shape == (batch * seq, 1), out.shape
    # Both matmuls run in bf16 on the MXU (f32 accumulation), so the comparison
    # against the pure-f32 reference uses a bf16-appropriate tolerance.
    max_err = float(jnp.max(jnp.abs(out - ref)))
    assert jnp.allclose(out, ref, atol=5e-2, rtol=5e-2), f"mismatch vs reference, max_err={max_err}"

    print("KERNEL_OK")
</pallas_src>

<mosaic_0001>
module attributes {stable_mosaic.version = 11 : i64} {
  func.func @nap_kernel(%arg0: i32, %arg1: memref<16x32xf32, #tpu.memory_space<vmem>>, %arg2: memref<32x32xbf16, #tpu.memory_space<vmem>>, %arg3: memref<4x32xf32, #tpu.memory_space<vmem>>, %arg4: memref<1x1xf32, #tpu.memory_space<smem>>, %arg5: memref<1x16xf32, #tpu.memory_space<vmem>>) attributes {dimension_semantics = [#tpu.dimension_semantics<parallel>], iteration_bounds = array<i64: 1>, scalar_prefetch = 0 : i64, scratch_operands = 0 : i64, tpu.core_type = #tpu.core_type<tc>, window_params = [{pipeline_mode = #tpu.pipeline_mode<double_buffered>, transform_indices = @transform_0, window_bounds = array<i64: 16, 32>}, {pipeline_mode = #tpu.pipeline_mode<synchronous>, transform_indices = @transform_1, window_bounds = array<i64: 32, 32>}, {pipeline_mode = #tpu.pipeline_mode<synchronous>, transform_indices = @transform_2, window_bounds = array<i64: 4, 32>}, {transform_indices = @transform_3, window_bounds = array<i64: 1, 1>}, {transform_indices = @transform_4, window_bounds = array<i64: 1, 16>}]} {
    %c0 = arith.constant 0 : index
    %c0_0 = arith.constant 0 : index
    %0 = vector.load %arg1[%c0, %c0_0] : memref<16x32xf32, #tpu.memory_space<vmem>>, vector<16x32xf32>
    %1 = arith.truncf %0 : vector<16x32xf32> to vector<16x32xbf16>
    %c0_1 = arith.constant 0 : index
    %c0_2 = arith.constant 0 : index
    %2 = vector.load %arg2[%c0_1, %c0_2] : memref<32x32xbf16, #tpu.memory_space<vmem>>, vector<32x32xbf16>
    %cst = arith.constant dense<0.000000e+00> : vector<16x32xf32>
    %3 = tpu.matmul %1, %2, %cst {dimension_numbers = #tpu.dot_dimension_numbers<[1], [0], [0], [1], [0, 0, 1, 1], [], []>} : vector<16x32xbf16>, vector<32x32xbf16>, vector<16x32xf32> -> vector<16x32xf32>
    %c0_3 = arith.constant 0 : index
    %c0_4 = arith.constant 0 : index
    %4 = vector.load %arg3[%c0_3, %c0_4] : memref<4x32xf32, #tpu.memory_space<vmem>>, vector<1x32xf32>
    %c1 = arith.constant 1 : index
    %c0_5 = arith.constant 0 : index
    %5 = vector.load %arg3[%c1, %c0_5] : memref<4x32xf32, #tpu.memory_space<vmem>>, vector<1x32xf32>
    %c2 = arith.constant 2 : index
    %c0_6 = arith.constant 0 : index
    %6 = vector.load %arg3[%c2, %c0_6] : memref<4x32xf32, #tpu.memory_space<vmem>>, vector<1x32xf32>
    %c3 = arith.constant 3 : index
    %c0_7 = arith.constant 0 : index
    %7 = vector.load %arg3[%c3, %c0_7] : memref<4x32xf32, #tpu.memory_space<vmem>>, vector<1x32xf32>
    %8 = vector.broadcast %4 : vector<1x32xf32> to vector<16x32xf32>
    %9 = arith.addf %3, %8 : vector<16x32xf32>
    %cst_8 = arith.constant 0.000000e+00 : f32
    %10 = vector.broadcast %cst_8 : f32 to vector<16x32xf32>
    %11 = arith.maximumf %9, %10 : vector<16x32xf32>
    %cst_9 = arith.constant dense<0.000000e+00> : vector<16xf32>
    %12 = vector.multi_reduction <add>, %11, %cst_9 [1] : vector<16x32xf32> to vector<16xf32>
    %13 = vector.shape_cast %12 : vector<16xf32> to vector<16x1xf32>
    %14 = arith.mulf %11, %11 : vector<16x32xf32>
    %cst_10 = arith.constant dense<0.000000e+00> : vector<16xf32>
    %15 = vector.multi_reduction <add>, %14, %cst_10 [1] : vector<16x32xf32> to vector<16xf32>
    %16 = vector.shape_cast %15 : vector<16xf32> to vector<16x1xf32>
    %cst_11 = arith.constant 3.125000e-02 : f32
    %17 = vector.broadcast %cst_11 : f32 to vector<16x1xf32>
    %18 = arith.mulf %13, %17 : vector<16x1xf32>
    %cst_12 = arith.constant 3.125000e-02 : f32
    %19 = vector.broadcast %cst_12 : f32 to vector<16x1xf32>
    %20 = arith.mulf %16, %19 : vector<16x1xf32>
    %21 = arith.mulf %18, %18 : vector<16x1xf32>
    %22 = arith.subf %20, %21 : vector<16x1xf32>
    %cst_13 = arith.constant 0.000000e+00 : f32
    %23 = vector.broadcast %cst_13 : f32 to vector<16x1xf32>
    %24 = arith.maximumf %22, %23 : vector<16x1xf32>
    %25 = vector.broadcast %18 : vector<16x1xf32> to vector<16x32xf32>
    %26 = arith.subf %11, %25 : vector<16x32xf32>
    %cst_14 = arith.constant 9.99999996E-13 : f32
    %27 = vector.broadcast %cst_14 : f32 to vector<16x1xf32>
    %28 = arith.addf %24, %27 : vector<16x1xf32>
    %29 = math.rsqrt %28 : vector<16x1xf32>
    %30 = vector.broadcast %29 : vector<16x1xf32> to vector<16x32xf32>
    %31 = arith.mulf %26, %30 : vector<16x32xf32>
    %32 = vector.broadcast %5 : vector<1x32xf32> to vector<16x32xf32>
    %33 = arith.mulf %31, %32 : vector<16x32xf32>
    %34 = vector.broadcast %6 : vector<1x32xf32> to vector<16x32xf32>
    %35 = arith.addf %33, %34 : vector<16x32xf32>
    %36 = arith.truncf %7 : vector<1x32xf32> to vector<1x32xbf16>
    %37 = arith.truncf %35 : vector<16x32xf32> to vector<16x32xbf16>
    %cst_15 = arith.constant dense<0.000000e+00> : vector<1x16xf32>
    %38 = tpu.matmul %36, %37, %cst_15 {dimension_numbers = #tpu.dot_dimension_numbers<[1], [1], [0], [0], [0, 0, 1, 0], [], []>} : vector<1x32xbf16>, vector<16x32xbf16>, vector<1x16xf32> -> vector<1x16xf32>
    %c0_16 = arith.constant 0 : index
    %c0_17 = arith.constant 0 : index
    %39 = memref.load %arg4[%c0_16, %c0_17] : memref<1x1xf32, #tpu.memory_space<smem>>
    %40 = vector.broadcast %39 : f32 to vector<1x16xf32>
    %41 = arith.addf %38, %40 : vector<1x16xf32>
    %c0_18 = arith.constant 0 : index
    %c0_19 = arith.constant 0 : index
    %42 = vector.load %arg5[%c0_18, %c0_19] : memref<1x16xf32, #tpu.memory_space<vmem>>, vector<1x16xf32>
    tpu.vector_store %arg5[%c0_18, %c0_19], %41 {strides = array<i32>} : memref<1x16xf32, #tpu.memory_space<vmem>>, vector<1x16xf32>,
    return
  }
  func.func @transform_0(%arg0: i32) -> (i32, i32) {
    %c0_i32 = arith.constant 0 : i32
    %c0_i32_0 = arith.constant 0 : i32
    return %arg0, %c0_i32 : i32, i32
  }
  func.func @transform_1(%arg0: i32) -> (i32, i32) {
    %c0_i32 = arith.constant 0 : i32
    %c0_i32_0 = arith.constant 0 : i32
    %c0_i32_1 = arith.constant 0 : i32
    return %c0_i32, %c0_i32_0 : i32, i32
  }
  func.func @transform_2(%arg0: i32) -> (i32, i32) {
    %c0_i32 = arith.constant 0 : i32
    %c0_i32_0 = arith.constant 0 : i32
    %c0_i32_1 = arith.constant 0 : i32
    return %c0_i32, %c0_i32_0 : i32, i32
  }
  func.func @transform_3(%arg0: i32) -> (i32, i32) {
    %c0_i32 = arith.constant 0 : i32
    %c0_i32_0 = arith.constant 0 : i32
    %c0_i32_1 = arith.constant 0 : i32
    return %c0_i32, %c0_i32_0 : i32, i32
  }
  func.func @transform_4(%arg0: i32) -> (i32, i32) {
    %c0_i32 = arith.constant 0 : i32
    %c0_i32_0 = arith.constant 0 : i32
    return %c0_i32, %arg0 : i32, i32
  }
}

</mosaic_0001>

<llo_original>
// kernel: tpu_custom_call.1
$region0: #{tpu_custom_call.1}
  #allocation0 [shape = 'u32[]', space=smem, size = 0x4, offset = 0x4, fixed_abs, tag = 'smem constant byte address 0x4 - core index']
  #allocation1 [shape = 'u32[144,128]{1,0:T(1,128)}', space=vmem, size = 0x12000, scoped, tag = 'internal scratch']
  #allocation2 [shape = 'f32[1,1]{1,0:T(1,128)S(6)}', space=smem, size = 0x200, scoped, tag = 'scoped memory for tpu_custom_call.1']
  %s0 = inlined_call_operand.hbm [shape: f32[16,32], index: 0, kind: input, shape index: {}]
  %s1 = inlined_call_operand.hbm [shape: bf16[32,32], index: 1, kind: input, shape index: {}]
  %s2 = inlined_call_operand.vmem [shape: f32[4,32], index: 2, kind: input, shape index: {}]
  %s3 = inlined_call_operand.<no memory space> [shape: f32[1,1], index: 3, kind: input, shape index: {}]
  %s4 = inlined_call_operand.hbm [shape: f32[1,16], index: 4, kind: output, shape index: {}]
  %s5 = sld [smem:[#allocation0]]
  $region34: #{tpu_custom_call.1} parent=0
    _
  %s7 = ssub.s32 1, %s5
  %s8 = scalar_select 0, %s7, %s5
  %9 = sst [smem:[#allocation2]] %s3
  $region1: #{tpu_custom_call.1} parent=0
    #allocation3 [shape = 'u8[8192]{0}', space=vmem, size = 0x2000, scoped, tag = 'input window, operand 0, single buffered']
    #allocation4 [shape = 's32[1]{0}', space=sflag, size = 0x4, scoped, tag = 'scoped memory for tpu_custom_call.1']
    #allocation5 [shape = 's32[1]{0}', space=sflag, size = 0x4, scoped, tag = 'scoped memory for tpu_custom_call.1']
    #allocation6 [shape = 'u8[8192]{0}', space=vmem, size = 0x2000, scoped, tag = 'input window, operand 1, single buffered']
    #allocation7 [shape = 's32[1]{0}', space=sflag, size = 0x4, scoped, tag = 'scoped memory for tpu_custom_call.1']
    #allocation8 [shape = 'u8[512]{0}', space=vmem, size = 0x400, scoped, tag = 'output window, operand 0, single buffered']
    %10 = vsyncpa [#allocation4], 0
    %11 = vsyncpa [#allocation7], 0
    %12 = vsyncpa [#allocation5], 0
    // Predicated region
    $region2: #{tpu_custom_call.1} parent=1 // pred_check
      _
    $region3: #{tpu_custom_call.1} parent=1 // pred_check_branch
      %14 = sbr.rel (0) target = $region5
    $region4: #{tpu_custom_call.1} parent=1 // pred_region
      %s16 = ssub.s32 256, 256
      %17 = vsyncadd [#allocation4], %s16
      %s18 = sshll.u32 [#allocation3], 4
      %s19 = int_to_ptr.vmem [resolvable:$true] %s18
      %24 = dma.hbm_to_vmem [thread:$0]  %s0, 256, %s19, [#allocation4], 128, 128, 8
    $region5: #{tpu_custom_call.1} parent=1 // pred_fallthru
      _
    // Predicated region
    $region6: #{tpu_custom_call.1} parent=1 // pred_check
      _
    $region7: #{tpu_custom_call.1} parent=1 // pred_check_branch
      %26 = sbr.rel (0) target = $region9
    $region8: #{tpu_custom_call.1} parent=1 // pred_region
      %s28 = ssub.s32 256, 256
      %29 = vsyncadd [#allocation7], %s28
      %s30 = sshll.u32 [#allocation6], 4
      %s31 = int_to_ptr.vmem [resolvable:$true] %s30
      %36 = dma.hbm_to_vmem [thread:$0]  %s1, 256, %s31, [#allocation7], 64, 64, 4
    $region9: #{tpu_custom_call.1} parent=1 // pred_fallthru
      _
    // Predicated region
    $region10: #{tpu_custom_call.1} parent=1 // pred_check
      _
    $region11: #{tpu_custom_call.1} parent=1 // pred_check_branch
      %38 = sbr.rel (0) target = $region13
    $region12: #{tpu_custom_call.1} parent=1 // pred_region
      _
    $region13: #{tpu_custom_call.1} parent=1 // pred_fallthru
      _
    // Predicated region
    $region14: #{tpu_custom_call.1} parent=1 // pred_check
      _
    $region15: #{tpu_custom_call.1} parent=1 // pred_check_branch
      %40 = sbr.rel (0) target = $region17
    $region16: #{tpu_custom_call.1} parent=1 // pred_region
      _
    $region17: #{tpu_custom_call.1} parent=1 // pred_fallthru
      _
    // Predicated region
    $region18: #{tpu_custom_call.1} parent=1 // pred_check
      _
    $region19: #{tpu_custom_call.1} parent=1 // pred_check_branch
      %42 = sbr.rel (0) target = $region21
    $region20: #{tpu_custom_call.1} parent=1 // pred_region
      %43 = dma.done [#allocation4], 256
    $region21: #{tpu_custom_call.1} parent=1 // pred_fallthru
      _
    // Predicated region
    $region22: #{tpu_custom_call.1} parent=1 // pred_check
      _
    $region23: #{tpu_custom_call.1} parent=1 // pred_check_branch
      %45 = sbr.rel (0) target = $region25
    $region24: #{tpu_custom_call.1} parent=1 // pred_region
      %46 = dma.done [#allocation7], 256
    $region25: #{tpu_custom_call.1} parent=1 // pred_fallthru
      _
    %v48 = vld [vmem:[#allocation3] sm:$0xff]
    %v49 = vld [vmem:[#allocation3 + $0x8] sm:$0xff]
    %v50 = vpack.c.bf16 %v49, %v48
    %v51 = vld [vmem:[#allocation6] sm:$0xf]
    %v52 = vld [vmem:[#allocation6 + $0x4] sm:$0xf]
    %v53 = vld [vmem:[#allocation6 + $0x8] sm:$0xf]
    %v54 = vld [vmem:[#allocation6 + $0xc] sm:$0xf]
    %v55 = vld [vmem:[%s2] sm:$0x1]
    %v56 = vld [vmem:[%s2 + $0x1] sm:$0x1]
    %v57 = vld [vmem:[%s2 + $0x2] sm:$0x1]
    %v58 = vld [vmem:[%s2 + $0x3] sm:$0x1]
    %v59 = vlaneseq
    %v60 = vshrl.u32 %v59, 7
    %v61 = vsub.s32 0, %v60
    %v62 = vrot.slane %v55, %v61
    %v67 = vunpack.c.l.b16 %v51
    %v68 = vunpack.c.l.b16 %v52
    %v69 = vunpack.c.l.b16 %v53
    %v70 = vunpack.c.l.b16 %v54
    %v71 = vpack.c.b16 %v68, %v67
    %v72 = vpack.c.b16 %v70, %v69
    %vm75 = vcmask 261120
    %v77 = vsel %vm75, %v50, 0
    %79 = vmatprep.subr.bf16.mxu0 0
    %80 = vmatpush1.bf16.msra.mxu0 0
    %81 = vmatprep.subr.bf16.mxu0 0
    %82 = vmatpush1.bf16.msra.mxu0 0
    %83 = vmatprep.subr.bf16.mxu0 0
    %84 = vmatpush1.bf16.msra.mxu0 0
    %85 = vmatprep.subr.bf16.mxu0 0
    %86 = vmatpush1.bf16.msra.mxu0 0
    %87 = vmatprep.subr.bf16.mxu0 0
    %88 = vmatpush1.bf16.msra.mxu0 0
    %89 = vmatprep.subr.bf16.mxu0 0
    %90 = vmatpush1.bf16.msra.mxu0 0
    %91 = vmatprep.subr.bf16.mxu0 0
    %92 = vmatpush1.bf16.msra.mxu0 %v72
    %93 = vmatprep.subr.bf16.mxu0 0
    %94 = vmatpush1.bf16.msra.mxu0 %v71
    %95 = vmatprep.subr.bf16.mxu0 0
    %96 = vmatpush2.bf16.msra.mxu0 0
    %97 = vmatprep.subr.bf16.mxu0 0
    %98 = vmatpush2.bf16.msra.mxu0 0
    %99 = vmatprep.subr.bf16.mxu0 0
    %100 = vmatpush2.bf16.msra.mxu0 0
    %101 = vmatprep.subr.bf16.mxu0 0
    %102 = vmatpush2.bf16.msra.mxu0 0
    %103 = vmatprep.subr.bf16.mxu0 0
    %104 = vmatpush2.bf16.msra.mxu0 0
    %105 = vmatprep.subr.bf16.mxu0 0
    %106 = vmatpush2.bf16.msra.mxu0 0
    %107 = vmatprep.subr.bf16.mxu0 0
    %108 = vmatpush2.bf16.msra.mxu0 0
    %109 = vmatprep.subr.bf16.mxu0 0
    %110 = vmatpush2.bf16.msra.mxu0 0
    %111 = vmatprep.mubr.bf16.mxu0 0
    %112 = vmatmul.mubr.bf16.gmra.mxu0 %v77
    %v113 = vpop.f32.mrf.mxu0
    %v114 = vadd.f32 %v62, %v113
    %v115 = vpop.f32.mrf.mxu0
    %v116 = vpop.f32.mrf.mxu0
    %v117 = vadd.f32 %v62, %v116
    %v118 = vpop.f32.mrf.mxu0
    %119 = vdwg.mxu0
    %v120 = vmax.f32 %v114, 0.0
    %v121 = vmax.f32 %v117, 0.0
    %v122 = vsel %vm75, %v120, 0.0
    %123 = vadd.xlane.f32.xlu0 %v122
    %v124 = vpop.xlane.xlu0 %123
    %v125 = vsel %vm75, %v121, 0.0
    %126 = vadd.xlane.f32.xlu0 %v125
    %v127 = vpop.xlane.xlu0 %126
    %v128 = vmul.f32 %v120, %v120
    %v129 = vmul.f32 %v121, %v121
    %v130 = vsel %vm75, %v128, 0.0
    %131 = vadd.xlane.f32.xlu0 %v130
    %v132 = vpop.xlane.xlu0 %131
    %v133 = vsel %vm75, %v129, 0.0
    %134 = vadd.xlane.f32.xlu0 %v133
    %v135 = vpop.xlane.xlu0 %134
    %v136 = vmul.f32 %v124, 0.03125
    %v137 = vmul.f32 %v127, 0.03125
    %v138 = vmul.f32 %v132, 0.03125
    %v139 = vmul.f32 %v135, 0.03125
    %v140 = vmul.f32 %v136, %v136
    %v141 = vmul.f32 %v137, %v137
    %v142 = vsub.f32 %v138, %v140
    %v143 = vsub.f32 %v139, %v141
    %v144 = vmax.f32 %v142, 0.0
    %v145 = vmax.f32 %v143, 0.0
    %v146 = vsub.f32 %v120, %v136
    %v147 = vsub.f32 %v121, %v137
    %v148 = vadd.f32 %v144, 1e-12
    %v149 = vadd.f32 %v145, 1e-12
    %v150 = vrsqrt.pop %v148
    %v151 = vrsqrt.pop %v149
    %v152 = vmul.f32 %v146, %v150
    %v153 = vmul.f32 %v147, %v151
    %v154 = vlaneseq
    %v155 = vshrl.u32 %v154, 7
    %v156 = vsub.s32 0, %v155
    %v157 = vrot.slane %v56, %v156
    %v158 = vmul.f32 %v152, %v157
    %v159 = vmul.f32 %v153, %v157
    %v160 = vlaneseq
    %v161 = vshrl.u32 %v160, 7
    %v162 = vsub.s32 0, %v161
    %v163 = vrot.slane %v57, %v162
    %v164 = vadd.f32 %v158, %v163
    %v165 = vadd.f32 %v159, %v163
    %v166 = vpack.c.bf16 %v58, %v58
    %v167 = vpack.c.bf16 %v165, %v164
    %s168 = sld [smem:[#allocation2]]
    %v169 = vstv %s168
    %v171 = vsel %vm75, %v166, 0
    %v174 = vsel %vm75, %v167, 0
    %176 = vmatprep.subr.bf16.mxu0 0
    %177 = vmatpush1.bf16.xpose.msra.mxu0 0
    %178 = vmatprep.subr.bf16.mxu0 0
    %179 = vmatpush1.bf16.xpose.msra.mxu0 0
    %180 = vmatprep.subr.bf16.mxu0 0
    %181 = vmatpush1.bf16.xpose.msra.mxu0 0
    %182 = vmatprep.subr.bf16.mxu0 0
    %183 = vmatpush1.bf16.xpose.msra.mxu0 0
    %184 = vmatprep.subr.bf16.mxu0 0
    %185 = vmatpush1.bf16.xpose.msra.mxu0 0
    %186 = vmatprep.subr.bf16.mxu0 0
    %187 = vmatpush1.bf16.xpose.msra.mxu0 0
    %188 = vmatprep.subr.bf16.mxu0 0
    %189 = vmatpush1.bf16.xpose.msra.mxu0 0
    %190 = vmatprep.subr.bf16.mxu0 0
    %191 = vmatpush1.bf16.xpose.msra.mxu0 %v174
    %192 = vmatprep.subr.bf16.mxu0 0
    %193 = vmatpush2.bf16.xpose.msra.mxu0 0
    %194 = vmatprep.subr.bf16.mxu0 0
    %195 = vmatpush2.bf16.xpose.msra.mxu0 0
    %196 = vmatprep.subr.bf16.mxu0 0
    %197 = vmatpush2.bf16.xpose.msra.mxu0 0
    %198 = vmatprep.subr.bf16.mxu0 0
    %199 = vmatpush2.bf16.xpose.msra.mxu0 0
    %200 = vmatprep.subr.bf16.mxu0 0
    %201 = vmatpush2.bf16.xpose.msra.mxu0 0
    %202 = vmatprep.subr.bf16.mxu0 0
    %203 = vmatpush2.bf16.xpose.msra.mxu0 0
    %204 = vmatprep.subr.bf16.mxu0 0
    %205 = vmatpush2.bf16.xpose.msra.mxu0 0
    %206 = vmatprep.subr.bf16.mxu0 0
    %207 = vmatpush2.bf16.xpose.msra.mxu0 0
    %208 = vmatprep.mubr.bf16.mxu0 0
    %209 = vmatmul.mubr.bf16.gmra.mxu0 %v171
    %v210 = vpop.f32.mrf.mxu0
    %v211 = vadd.f32 %v169, %v210
    %v212 = vpop.f32.mrf.mxu0
    %v213 = vpop.f32.mrf.mxu0
    %v214 = vpop.f32.mrf.mxu0
    %215 = vdwg.mxu0
    %vm216 = vcmask 122880
    %217 = vst.msk [vmem:[#allocation8] sm:$0x1] %vm216, %v211
    // Predicated region
    $region26: #{tpu_custom_call.1} parent=1 // pred_check
      _
    $region27: #{tpu_custom_call.1} parent=1 // pred_check_branch
      %219 = sbr.rel (0) target = $region29
    $region28: #{tpu_custom_call.1} parent=1 // pred_region
      %s221 = ssub.s32 16, 16
      %222 = vsyncadd [#allocation5], %s221
      %s224 = sshll.u32 [#allocation8], 4
      %s225 = int_to_ptr.vmem [resolvable:$true] %s224
      %227 = dma.vmem_to_hbm [thread:$0]  %s225, 16, %s4, [#allocation5]
    $region29: #{tpu_custom_call.1} parent=1 // pred_fallthru
      _
    // Predicated region
    $region30: #{tpu_custom_call.1} parent=1 // pred_check
      _
    $region31: #{tpu_custom_call.1} parent=1 // pred_check_branch
      %229 = sbr.rel (0) target = $region33
    $region32: #{tpu_custom_call.1} parent=1 // pred_region
      %230 = dma.done [#allocation5], 16
    $region33: #{tpu_custom_call.1} parent=1 // pred_fallthru
      _
    %231 = vsyncpa [#allocation4], 1
    %232 = vsyncpa [#allocation7], 1
    %233 = vsyncpa [#allocation5], 1

</llo_original>
